<compile_context>
chip_gen: v6e
topology: v6e:2x2x1
jax: 0.10.0
libtpu: 0.0.40
codegen_flags: <defaults>
</compile_context>

<pallas_src>
import functools
import math

import jax
import jax.numpy as jnp
from jax import lax
from jax.experimental import pallas as pl
from jax.experimental.pallas import tpu as pltpu


def _round_up(x, m):
    return ((x + m - 1) // m) * m


# ----------------------------------------------------------------------------
# Pallas kernel: projection matmul (MXU) + bias + fused LayerNorm(embed_dim)
# ----------------------------------------------------------------------------
def _patch_embed_kernel(p_ref, w_ref, b_ref, g_ref, beta_ref, o_ref, *,
                        embed_dim):
    # p_ref:    (TILE_N, K)   patch tile for this grid step (bf16/f32)
    # w_ref:    (K, E)        projection matrix, resident (constant index map)
    # b_ref:    (1, E) f32    conv bias
    # g_ref:    (1, E) f32    LayerNorm gamma
    # beta_ref: (1, E) f32    LayerNorm beta
    # o_ref:    (TILE_N, E)
    acc = jnp.dot(p_ref[...], w_ref[...], preferred_element_type=jnp.float32)
    acc = acc + b_ref[...]

    # LayerNorm over the (un-padded) embed dimension, all in f32.
    inv_e = jnp.float32(1.0 / embed_dim)
    mean = jnp.sum(acc, axis=-1, keepdims=True) * inv_e
    centered = acc - mean
    var = jnp.sum(centered * centered, axis=-1, keepdims=True) * inv_e
    inv = lax.rsqrt(var + 1e-5)            # eps matches torch LayerNorm default
    o_ref[...] = (centered * (inv * g_ref[...]) + beta_ref[...]).astype(o_ref.dtype)


def _pallas_patch_embed(patches, w_mat, bias, ln_w, ln_b, *, embed_dim,
                        out_dtype, tile_n=512):
    N, K = patches.shape
    E = embed_dim

    # >= 2 grid steps when possible (keeps both v7x TensorCores busy under the
    # "parallel" axis) with a sublane-aligned row tile.  Full-extent K / E
    # blocks need no 128-padding.
    if N < 8:
        tile_n = N                                  # full-extent (exempt) block
    else:
        tile_n = min(tile_n, max(8, _round_up(-(-N // 2), 8)))
    grid_n = pl.cdiv(N, tile_n)

    b_p = bias.astype(jnp.float32).reshape(1, E)
    g_p = ln_w.astype(jnp.float32).reshape(1, E)
    beta_p = ln_b.astype(jnp.float32).reshape(1, E)

    # VMEM budget: Pallas double-buffers *every* spec by default, so count the
    # resident weight twice too.  Estimate with lane/sublane-padded extents and
    # 1.5x headroom, capped comfortably under the smallest (v7x, 64 MiB) VMEM.
    in_b = jnp.dtype(patches.dtype).itemsize
    out_b = jnp.dtype(out_dtype).itemsize
    K_v, E_v, t_v = _round_up(K, 128), _round_up(E, 128), _round_up(tile_n, 16)
    pipelined = 2 * t_v * K_v * in_b + 2 * t_v * E_v * out_b
    resident = 2 * (K_v * E_v * in_b + 3 * E_v * 4)
    work = 4 * t_v * E_v * 4                        # f32 acc + LN intermediates
    vmem_limit = int(min(48 << 20,
                         max(16 << 20, 1.5 * (pipelined + resident + work))))

    kernel = functools.partial(_patch_embed_kernel, embed_dim=E)

    return pl.pallas_call(
        kernel,
        out_shape=jax.ShapeDtypeStruct((N, E), out_dtype),
        grid_spec=pltpu.PrefetchScalarGridSpec(
            num_scalar_prefetch=0,
            grid=(grid_n,),
            in_specs=[
                pl.BlockSpec((tile_n, K), lambda i: (i, 0)),   # patch stream
                pl.BlockSpec((K, E), lambda i: (0, 0)),        # resident weight
                pl.BlockSpec((1, E), lambda i: (0, 0)),        # bias
                pl.BlockSpec((1, E), lambda i: (0, 0)),        # gamma
                pl.BlockSpec((1, E), lambda i: (0, 0)),        # beta
            ],
            out_specs=pl.BlockSpec((tile_n, E), lambda i: (i, 0)),
        ),
        compiler_params=pltpu.CompilerParams(
            dimension_semantics=("parallel",),      # rows independent -> megacore
            vmem_limit_bytes=vmem_limit,
        ),
    )(patches, w_mat, b_p, g_p, beta_p)


# ----------------------------------------------------------------------------
# Glue: fused im2col (matches PyTorch Conv2d geometry + weight ordering)
# ----------------------------------------------------------------------------
def _extract_patches_nchw(x, kh, kw, stride, pad_h, pad_w):
    """x: (B, C, H, W) -> (B*Ho*Wo, C*kh*kw); feature order (C, kh, kw).

    The output spec is "NHWC" (feature-last), so the flatten below is a free
    reshape rather than a materialized transpose of the whole patch matrix.
    The feature ordering (channel-major: c*kh*kw + i*kw + j) is independent of
    the output layout and matches torch's conv weight.reshape(E, -1).
    """
    B = x.shape[0]
    p = lax.conv_general_dilated_patches(
        x, filter_shape=(kh, kw), window_strides=(stride, stride),
        padding=[(pad_h, pad_h), (pad_w, pad_w)],
        dimension_numbers=("NCHW", "OIHW", "NHWC"))    # (B, Ho, Wo, C*kh*kw)
    _, Ho, Wo, K = p.shape
    return p.reshape(B * Ho * Wo, K), Ho, Wo


# ----------------------------------------------------------------------------
# PatchEmbed forward
# ----------------------------------------------------------------------------
def patch_embed_forward(x, params, patch_size, stride, *,
                        operand_dtype=jnp.bfloat16, out_dtype=None):
    """x: (B, C, H, W) NCHW.  Returns (out, H_out, W_out), out (B, Ho*Wo, E)."""
    kh, kw = patch_size
    pad_h, pad_w = kh // 2, kw // 2
    B = x.shape[0]
    out_dtype = out_dtype or x.dtype

    # Cast before im2col: on the bf16 path this halves the patch-matrix HBM
    # traffic (the patch "conv" is a pure 0/1 selection, so the only loss is
    # the input quantization itself).
    x_op = x.astype(operand_dtype)
    patches, Ho, Wo = _extract_patches_nchw(x_op, kh, kw, stride, pad_h, pad_w)

    conv_w = params["conv_w"]                        # (E, C, kh, kw) torch layout
    E = conv_w.shape[0]
    w_mat = conv_w.reshape(E, -1).T.astype(operand_dtype)   # (C*kh*kw, E)

    out_flat = _pallas_patch_embed(
        patches, w_mat, params["conv_b"], params["ln_w"], params["ln_b"],
        embed_dim=E, out_dtype=out_dtype)
    return out_flat.reshape(B, Ho * Wo, E), Ho, Wo


# ----------------------------------------------------------------------------
# Deterministic parameter init (mirrors the module's _init_weights)
# ----------------------------------------------------------------------------
def init_params(key, in_chans, embed_dim, patch_size):
    kh, kw = patch_size
    fan_out = kh * kw * embed_dim
    std = math.sqrt(2.0 / fan_out)
    conv_w = std * jax.random.normal(key, (embed_dim, in_chans, kh, kw),
                                     dtype=jnp.float32)
    conv_b = jnp.zeros((embed_dim,), jnp.float32)
    ln_w = jnp.ones((embed_dim,), jnp.float32)
    ln_b = jnp.zeros((embed_dim,), jnp.float32)
    return {"conv_w": conv_w, "conv_b": conv_b, "ln_w": ln_w, "ln_b": ln_b}


if __name__ == "__main__":
    # Small config consistent with the module: patch=7, stride=4.
    B, C, H, W = 2, 4, 16, 16
    patch_size = (7, 7)
    stride = 4
    embed_dim = 32

    key = jax.random.PRNGKey(0)
    k_x, k_w = jax.random.split(key)
    x = jax.random.normal(k_x, (B, C, H, W), dtype=jnp.float32)
    params = init_params(k_w, C, embed_dim, patch_size)

    # --- Pure-JAX reference: conv + bias + LayerNorm (all f32) ---------------
    ref_conv = lax.conv_general_dilated(
        x, params["conv_w"], window_strides=(stride, stride),
        padding=[(patch_size[0] // 2,) * 2, (patch_size[1] // 2,) * 2],
        dimension_numbers=("NCHW", "OIHW", "NCHW"),
    ) + params["conv_b"][None, :, None, None]
    _, _, Ho_r, Wo_r = ref_conv.shape
    ref = ref_conv.reshape(B, embed_dim, Ho_r * Wo_r).transpose(0, 2, 1)
    mu = ref.mean(-1, keepdims=True)
    var = ((ref - mu) ** 2).mean(-1, keepdims=True)
    ref = (ref - mu) / jnp.sqrt(var + 1e-5) * params["ln_w"] + params["ln_b"]

    # --- f32-operand path: validates patch ordering + LN math (tight) --------
    out32, Ho, Wo = patch_embed_forward(x, params, patch_size, stride,
                                        operand_dtype=jnp.float32)
    out32 = jax.block_until_ready(out32)
    assert out32.shape == (B, Ho * Wo, embed_dim), out32.shape
    assert Ho == 4 and Wo == 4
    assert jnp.allclose(out32, ref, atol=1e-4, rtol=1e-4)

    # --- default path: bf16 MXU operands, f32 accumulation, f32 output -------
    out_def, _, _ = patch_embed_forward(x, params, patch_size, stride)
    out_def = jax.block_until_ready(out_def)
    assert out_def.dtype == jnp.float32
    assert jnp.allclose(out_def, ref, atol=5e-2, rtol=5e-2)

    # --- bf16 writeback path (halves store-side HBM bytes) -------------------
    out_bf, _, _ = patch_embed_forward(x, params, patch_size, stride,
                                       out_dtype=jnp.bfloat16)
    out_bf = jax.block_until_ready(out_bf)
    assert out_bf.dtype == jnp.bfloat16
    assert jnp.allclose(out_bf.astype(jnp.float32), ref, atol=1e-1, rtol=1e-1)

    print("KERNEL_OK")
</pallas_src>

<mosaic_0001>
module attributes {stable_mosaic.version = 11 : i64} {
  func.func @_patch_embed_kernel(%arg0: i32, %arg1: memref<16x196xf32, #tpu.memory_space<vmem>>, %arg2: memref<196x32xf32, #tpu.memory_space<vmem>>, %arg3: memref<1x32xf32, #tpu.memory_space<vmem>>, %arg4: memref<1x32xf32, #tpu.memory_space<vmem>>, %arg5: memref<1x32xf32, #tpu.memory_space<vmem>>, %arg6: memref<16x32xf32, #tpu.memory_space<vmem>>) attributes {dimension_semantics = [#tpu.dimension_semantics<parallel>], iteration_bounds = array<i64: 2>, scalar_prefetch = 0 : i64, scratch_operands = 0 : i64, tpu.core_type = #tpu.core_type<tc>, window_params = [{transform_indices = @transform_0, window_bounds = array<i64: 16, 196>}, {pipeline_mode = #tpu.pipeline_mode<synchronous>, transform_indices = @transform_1, window_bounds = array<i64: 196, 32>}, {pipeline_mode = #tpu.pipeline_mode<synchronous>, transform_indices = @transform_2, window_bounds = array<i64: 1, 32>}, {pipeline_mode = #tpu.pipeline_mode<synchronous>, transform_indices = @transform_3, window_bounds = array<i64: 1, 32>}, {pipeline_mode = #tpu.pipeline_mode<synchronous>, transform_indices = @transform_4, window_bounds = array<i64: 1, 32>}, {transform_indices = @transform_5, window_bounds = array<i64: 16, 32>}]} {
    %c0 = arith.constant 0 : index
    %c0_0 = arith.constant 0 : index
    %0 = vector.load %arg1[%c0, %c0_0] : memref<16x196xf32, #tpu.memory_space<vmem>>, vector<16x196xf32>
    %c0_1 = arith.constant 0 : index
    %c0_2 = arith.constant 0 : index
    %1 = vector.load %arg2[%c0_1, %c0_2] : memref<196x32xf32, #tpu.memory_space<vmem>>, vector<196x32xf32>
    %cst = arith.constant dense<0.000000e+00> : vector<16x32xf32>
    %2 = tpu.matmul %0, %1, %cst {dimension_numbers = #tpu.dot_dimension_numbers<[1], [0], [0], [1], [0, 0, 1, 1], [], []>} : vector<16x196xf32>, vector<196x32xf32>, vector<16x32xf32> -> vector<16x32xf32>
    %c0_3 = arith.constant 0 : index
    %c0_4 = arith.constant 0 : index
    %3 = vector.load %arg3[%c0_3, %c0_4] : memref<1x32xf32, #tpu.memory_space<vmem>>, vector<1x32xf32>
    %4 = vector.broadcast %3 : vector<1x32xf32> to vector<16x32xf32>
    %5 = arith.addf %2, %4 : vector<16x32xf32>
    %cst_5 = arith.constant dense<0.000000e+00> : vector<16xf32>
    %6 = vector.multi_reduction <add>, %5, %cst_5 [1] : vector<16x32xf32> to vector<16xf32>
    %7 = vector.shape_cast %6 : vector<16xf32> to vector<16x1xf32>
    %cst_6 = arith.constant 3.125000e-02 : f32
    %8 = vector.broadcast %cst_6 : f32 to vector<16x1xf32>
    %9 = arith.mulf %7, %8 : vector<16x1xf32>
    %10 = vector.broadcast %9 : vector<16x1xf32> to vector<16x32xf32>
    %11 = arith.subf %5, %10 : vector<16x32xf32>
    %12 = arith.mulf %11, %11 : vector<16x32xf32>
    %cst_7 = arith.constant dense<0.000000e+00> : vector<16xf32>
    %13 = vector.multi_reduction <add>, %12, %cst_7 [1] : vector<16x32xf32> to vector<16xf32>
    %14 = vector.shape_cast %13 : vector<16xf32> to vector<16x1xf32>
    %cst_8 = arith.constant 3.125000e-02 : f32
    %15 = vector.broadcast %cst_8 : f32 to vector<16x1xf32>
    %16 = arith.mulf %14, %15 : vector<16x1xf32>
    %cst_9 = arith.constant 9.99999974E-6 : f32
    %17 = vector.broadcast %cst_9 : f32 to vector<16x1xf32>
    %18 = arith.addf %16, %17 : vector<16x1xf32>
    %19 = math.rsqrt %18 : vector<16x1xf32>
    %c0_10 = arith.constant 0 : index
    %c0_11 = arith.constant 0 : index
    %20 = vector.load %arg4[%c0_10, %c0_11] : memref<1x32xf32, #tpu.memory_space<vmem>>, vector<1x32xf32>
    %21 = vector.broadcast %19 : vector<16x1xf32> to vector<16x32xf32>
    %22 = vector.broadcast %20 : vector<1x32xf32> to vector<16x32xf32>
    %23 = arith.mulf %21, %22 : vector<16x32xf32>
    %24 = arith.mulf %11, %23 : vector<16x32xf32>
    %c0_12 = arith.constant 0 : index
    %c0_13 = arith.constant 0 : index
    %25 = vector.load %arg5[%c0_12, %c0_13] : memref<1x32xf32, #tpu.memory_space<vmem>>, vector<1x32xf32>
    %26 = vector.broadcast %25 : vector<1x32xf32> to vector<16x32xf32>
    %27 = arith.addf %24, %26 : vector<16x32xf32>
    %c0_14 = arith.constant 0 : index
    %c0_15 = arith.constant 0 : index
    %28 = vector.load %arg6[%c0_14, %c0_15] : memref<16x32xf32, #tpu.memory_space<vmem>>, vector<16x32xf32>
    tpu.vector_store %arg6[%c0_14, %c0_15], %27 {strides = array<i32>} : memref<16x32xf32, #tpu.memory_space<vmem>>, vector<16x32xf32>,
    return
  }
  func.func @transform_0(%arg0: i32) -> (i32, i32) {
    %c0_i32 = arith.constant 0 : i32
    %c0_i32_0 = arith.constant 0 : i32
    return %arg0, %c0_i32 : i32, i32
  }
  func.func @transform_1(%arg0: i32) -> (i32, i32) {
    %c0_i32 = arith.constant 0 : i32
    %c0_i32_0 = arith.constant 0 : i32
    %c0_i32_1 = arith.constant 0 : i32
    return %c0_i32, %c0_i32_0 : i32, i32
  }
  func.func @transform_2(%arg0: i32) -> (i32, i32) {
    %c0_i32 = arith.constant 0 : i32
    %c0_i32_0 = arith.constant 0 : i32
    %c0_i32_1 = arith.constant 0 : i32
    return %c0_i32, %c0_i32_0 : i32, i32
  }
  func.func @transform_3(%arg0: i32) -> (i32, i32) {
    %c0_i32 = arith.constant 0 : i32
    %c0_i32_0 = arith.constant 0 : i32
    %c0_i32_1 = arith.constant 0 : i32
    return %c0_i32, %c0_i32_0 : i32, i32
  }
  func.func @transform_4(%arg0: i32) -> (i32, i32) {
    %c0_i32 = arith.constant 0 : i32
    %c0_i32_0 = arith.constant 0 : i32
    %c0_i32_1 = arith.constant 0 : i32
    return %c0_i32, %c0_i32_0 : i32, i32
  }
  func.func @transform_5(%arg0: i32) -> (i32, i32) {
    %c0_i32 = arith.constant 0 : i32
    %c0_i32_0 = arith.constant 0 : i32
    return %arg0, %c0_i32 : i32, i32
  }
}

</mosaic_0001>

<llo_original>
// kernel: tpu_custom_call.1
$region0: #{tpu_custom_call.1}
  #allocation0 [shape = 'u32[]', space=smem, size = 0x4, offset = 0x4, fixed_abs, tag = 'smem constant byte address 0x4 - core index']
  #allocation1 [shape = 'u32[144,128]{1,0:T(1,128)}', space=vmem, size = 0x12000, scoped, tag = 'internal scratch']
  %s0 = inlined_call_operand.vmem [shape: f32[32,196], index: 0, kind: input, shape index: {}]
  %s1 = inlined_call_operand.vmem [shape: f32[196,32], index: 1, kind: input, shape index: {}]
  %s2 = inlined_call_operand.vmem [shape: f32[1,32], index: 2, kind: input, shape index: {}]
  %s3 = inlined_call_operand.vmem [shape: f32[1,32], index: 3, kind: input, shape index: {}]
  %s4 = inlined_call_operand.vmem [shape: f32[1,32], index: 4, kind: input, shape index: {}]
  %s5 = inlined_call_operand.hbm [shape: f32[32,32], index: 5, kind: output, shape index: {}]
  %s6 = sld [smem:[#allocation0]]
  $region53: #{tpu_custom_call.1} parent=0
    _
  %s8 = ssub.s32 1, %s6
  %s9 = scalar_select 0, %s8, %s6
  $region1: #{tpu_custom_call.1} parent=0
    #allocation2 [shape = 'u8[16384]{0}', space=vmem, size = 0x4000, scoped, tag = 'output window, operand 0']
    #allocation3 [shape = 's32[2]{0}', space=sflag, size = 0x8, scoped, tag = 'scoped memory for tpu_custom_call.1']
    %10 = vsyncpa [#allocation3], 0
    %s11 = scalar_lea.sflag [#allocation3], 1
    %12 = vsyncpa %s11, 0
    loop: start=0, step=1, limit=4
    $region2: #{tpu_custom_call.1} parent=1 // loop_pre_header
      _
    $region3: #{tpu_custom_call.1} parent=1 // loop_header
      %s14 = sphi 0, %s18
      %p15 = scmp.ge.s32.totalorder %s14, 4
      %s24 = sphi 0, %s26
      %s27 = sphi 0, %s24
      %s28 = sphi 0, %s27
      %s44 = sphi 0, %s28
      %s48 = sphi 0, %s48
      %s50 = sphi 0, %s48
      %s51 = sphi 0, %s50
      %s65 = sphi 0, %s51
      %s69 = sphi 0, %s69
      %s71 = sphi 0, %s69
      %s72 = sphi 0, %s71
      %s86 = sphi 0, %s72
      %s90 = sphi 0, %s90
      %s92 = sphi 0, %s90
      %s93 = sphi 0, %s92
      %s107 = sphi 0, %s93
      %s111 = sphi 0, %s111
      %s113 = sphi 0, %s111
      %s114 = sphi 0, %s113
      %s128 = sphi 0, %s114
      %s134 = sphi 0, %s136
      %s137 = sphi 0, %s134
      %s138 = sphi 0, %s137
      %s154 = sphi 0, %s138
    $region4: #{tpu_custom_call.1} parent=1 // loop_header_branch
      %17 = sbr.rel (%p15) target = $region8
    $region5: #{tpu_custom_call.1} parent=1 // loop_body
      %s19 = ssub.s32 %s14, 1
      %s20 = ssub.s32 %s14, 2
      %s21 = sadd.s32 %s14, 1
      %s22 = ssub.s32 %s14, %s21
      %p23 = scmp.eq.s32.totalorder %s22, 0
      %s25 = sadd.s32 %s24, 1
      %s26 = scalar_select %p23, %s24, %s25
      %p29 = pneg %p23
      %p30 = scmp.eq.s32.totalorder %s14, 1
      %p31 = por %p29, %p30
      %p32 = scmp.ne.s32.totalorder %s24, %s27
      %p33 = scmp.eq.s32.totalorder %s14, 0
      %p34 = por %p32, %p33
      %p35 = scmp.ne.s32.totalorder %s24, %s27
      %p36 = scmp.eq.s32.totalorder %s19, 1
      %p37 = por %p35, %p36
      %p38 = scmp.ne.s32.totalorder %s27, %s28
      %p39 = scmp.eq.s32.totalorder %s19, 0
      %p40 = por %p38, %p39
      %p41 = scmp.ne.s32.totalorder %s27, %s28
      %p42 = scmp.eq.s32.totalorder %s20, 1
      %p43 = por %p41, %p42
      %p45 = scmp.ne.s32.totalorder %s28, %s44
      %p46 = scmp.eq.s32.totalorder %s20, 0
      %p47 = por %p45, %p46
      %s49 = sadd.s32 %s48, 1
      %p52 = scmp.eq.s32.totalorder %s14, 1
      %p53 = scmp.ne.s32.totalorder %s48, %s50
      %p54 = scmp.eq.s32.totalorder %s14, 0
      %p55 = por %p53, %p54
      %p56 = scmp.ne.s32.totalorder %s48, %s50
      %p57 = scmp.eq.s32.totalorder %s19, 1
      %p58 = por %p56, %p57
      %p59 = scmp.ne.s32.totalorder %s50, %s51
      %p60 = scmp.eq.s32.totalorder %s19, 0
      %p61 = por %p59, %p60
      %p62 = scmp.ne.s32.totalorder %s50, %s51
      %p63 = scmp.eq.s32.totalorder %s20, 1
      %p64 = por %p62, %p63
      %p66 = scmp.ne.s32.totalorder %s51, %s65
      %p67 = scmp.eq.s32.totalorder %s20, 0
      %p68 = por %p66, %p67
      %s70 = sadd.s32 %s69, 1
      %p73 = scmp.eq.s32.totalorder %s14, 1
      %p74 = scmp.ne.s32.totalorder %s69, %s71
      %p75 = scmp.eq.s32.totalorder %s14, 0
      %p76 = por %p74, %p75
      %p77 = scmp.ne.s32.totalorder %s69, %s71
      %p78 = scmp.eq.s32.totalorder %s19, 1
      %p79 = por %p77, %p78
      %p80 = scmp.ne.s32.totalorder %s71, %s72
      %p81 = scmp.eq.s32.totalorder %s19, 0
      %p82 = por %p80, %p81
      %p83 = scmp.ne.s32.totalorder %s71, %s72
      %p84 = scmp.eq.s32.totalorder %s20, 1
      %p85 = por %p83, %p84
      %p87 = scmp.ne.s32.totalorder %s72, %s86
      %p88 = scmp.eq.s32.totalorder %s20, 0
      %p89 = por %p87, %p88
      %s91 = sadd.s32 %s90, 1
      %p94 = scmp.eq.s32.totalorder %s14, 1
      %p95 = scmp.ne.s32.totalorder %s90, %s92
      %p96 = scmp.eq.s32.totalorder %s14, 0
      %p97 = por %p95, %p96
      %p98 = scmp.ne.s32.totalorder %s90, %s92
      %p99 = scmp.eq.s32.totalorder %s19, 1
      %p100 = por %p98, %p99
      %p101 = scmp.ne.s32.totalorder %s92, %s93
      %p102 = scmp.eq.s32.totalorder %s19, 0
      %p103 = por %p101, %p102
      %p104 = scmp.ne.s32.totalorder %s92, %s93
      %p105 = scmp.eq.s32.totalorder %s20, 1
      %p106 = por %p104, %p105
      %p108 = scmp.ne.s32.totalorder %s93, %s107
      %p109 = scmp.eq.s32.totalorder %s20, 0
      %p110 = por %p108, %p109
      %s112 = sadd.s32 %s111, 1
      %p115 = scmp.eq.s32.totalorder %s14, 1
      %p116 = scmp.ne.s32.totalorder %s111, %s113
      %p117 = scmp.eq.s32.totalorder %s14, 0
      %p118 = por %p116, %p117
      %p119 = scmp.ne.s32.totalorder %s111, %s113
      %p120 = scmp.eq.s32.totalorder %s19, 1
      %p121 = por %p119, %p120
      %p122 = scmp.ne.s32.totalorder %s113, %s114
      %p123 = scmp.eq.s32.totalorder %s19, 0
      %p124 = por %p122, %p123
      %p125 = scmp.ne.s32.totalorder %s113, %s114
      %p126 = scmp.eq.s32.totalorder %s20, 1
      %p127 = por %p125, %p126
      %p129 = scmp.ne.s32.totalorder %s114, %s128
      %p130 = scmp.eq.s32.totalorder %s20, 0
      %p131 = por %p129, %p130
      %s132 = ssub.s32 %s14, %s21
      %p133 = scmp.eq.s32.totalorder %s132, 0
      %s135 = sadd.s32 %s134, 1
      %s136 = scalar_select %p133, %s134, %s135
      %p139 = pneg %p133
      %p140 = scmp.eq.s32.totalorder %s14, 1
      %p141 = por %p139, %p140
      %p142 = scmp.ne.s32.totalorder %s134, %s137
      %p143 = scmp.eq.s32.totalorder %s14, 0
      %p144 = por %p142, %p143
      %p145 = scmp.ne.s32.totalorder %s134, %s137
      %p146 = scmp.eq.s32.totalorder %s19, 1
      %p147 = por %p145, %p146
      %p148 = scmp.ne.s32.totalorder %s137, %s138
      %p149 = scmp.eq.s32.totalorder %s19, 0
      %p150 = por %p148, %p149
      %p151 = scmp.ne.s32.totalorder %s137, %s138
      %p152 = scmp.eq.s32.totalorder %s20, 1
      %p153 = por %p151, %p152
      %p155 = scmp.ne.s32.totalorder %s138, %s154
      %p156 = scmp.eq.s32.totalorder %s20, 0
      %p157 = por %p155, %p156
      %p158 = scmp.le.s32.totalorder 1, %s14
      %p159 = scmp.lt.s32.totalorder %s14, 3
      %p160 = pnand %p158, %p159
      %p161 = pneg %p160
      // Predicated region
      $region9: #{tpu_custom_call.1} parent=5 // pred_check
        _
      $region10: #{tpu_custom_call.1} parent=5 // pred_check_branch
        %163 = sbr.rel (%p160) target = $region12
      $region11: #{tpu_custom_call.1} parent=5 // pred_region
        %s164 = ssub.s32 %s14, 1
        // Predicated region
        $region13: #{tpu_custom_call.1} parent=11 // pred_check
          %p165 = pneg %p61
        $region14: #{tpu_custom_call.1} parent=11 // pred_check_branch
          %167 = sbr.rel (%p165) target = $region16
        $region15: #{tpu_custom_call.1} parent=11 // pred_region
          _
        $region16: #{tpu_custom_call.1} parent=11 // pred_fallthru
          _
        // Predicated region
        $region17: #{tpu_custom_call.1} parent=11 // pred_check
          %p168 = pneg %p82
        $region18: #{tpu_custom_call.1} parent=11 // pred_check_branch
          %170 = sbr.rel (%p168) target = $region20
        $region19: #{tpu_custom_call.1} parent=11 // pred_region
          _
        $region20: #{tpu_custom_call.1} parent=11 // pred_fallthru
          _
        // Predicated region
        $region21: #{tpu_custom_call.1} parent=11 // pred_check
          %p171 = pneg %p103
        $region22: #{tpu_custom_call.1} parent=11 // pred_check_branch
          %173 = sbr.rel (%p171) target = $region24
        $region23: #{tpu_custom_call.1} parent=11 // pred_region
          _
        $region24: #{tpu_custom_call.1} parent=11 // pred_fallthru
          _
        // Predicated region
        $region25: #{tpu_custom_call.1} parent=11 // pred_check
          %p174 = pneg %p124
        $region26: #{tpu_custom_call.1} parent=11 // pred_check_branch
          %176 = sbr.rel (%p174) target = $region28
        $region27: #{tpu_custom_call.1} parent=11 // pred_region
          _
        $region28: #{tpu_custom_call.1} parent=11 // pred_fallthru
          _
      $region12: #{tpu_custom_call.1} parent=5 // pred_fallthru
        _
      %p177 = scmp.lt.s32.totalorder %s14, 2
      // Predicated region
      $region29: #{tpu_custom_call.1} parent=5 // pred_check
        %p178 = pneg %p177
      $region30: #{tpu_custom_call.1} parent=5 // pred_check_branch
        %180 = sbr.rel (%p178) target = $region32
      $region31: #{tpu_custom_call.1} parent=5 // pred_region
        // Predicated region
        $region33: #{tpu_custom_call.1} parent=31 // pred_check
          %p181 = pneg %p34
        $region34: #{tpu_custom_call.1} parent=31 // pred_check_branch
          %183 = sbr.rel (%p181) target = $region36
        $region35: #{tpu_custom_call.1} parent=31 // pred_region
          %s184 = smul.u32 2, %s14
          %p185 = scmp.lt.s32.totalorder %s184, 3
          %s186 = scalar_select %p185, %s184, 3
          %s187 = smul.addr %s186, 2
          %s188 = smul.addr %s187, 8
          %s189 = scalar_lea.vmem %s0, %s188
          %s190 = smul.u32 2, %s14
        $region36: #{tpu_custom_call.1} parent=31 // pred_fallthru
          _
      $region32: #{tpu_custom_call.1} parent=5 // pred_fallthru
        _
      %p191 = scmp.le.s32.totalorder 1, %s14
      %p192 = scmp.lt.s32.totalorder %s14, 3
      %p193 = pnand %p191, %p192
      %p194 = pneg %p193
      // Predicated region
      $region37: #{tpu_custom_call.1} parent=5 // pred_check
        _
      $region38: #{tpu_custom_call.1} parent=5 // pred_check_branch
        %196 = sbr.rel (%p193) target = $region40
      $region39: #{tpu_custom_call.1} parent=5 // pred_region
        %s197 = ssub.s32 %s14, 1
        %s198 = smul.u32 2, %s19
        %p199 = scmp.lt.s32.totalorder %s198, 3
        %s200 = scalar_select %p199, %s198, 3
        %s201 = smul.addr %s200, 2
        %s202 = smul.addr %s201, 8
        %s203 = scalar_lea.vmem %s0, %s202
        %p204 = pneg %p40
        %p205 = pneg %p37
        %p206 = pneg %p61
        %p207 = pneg %p58
        %p208 = pneg %p82
        %p209 = pneg %p79
        %p210 = pneg %p103
        %p211 = pneg %p100
        %p212 = pneg %p124
        %p213 = pneg %p121
        %p214 = pneg %p150
        %p215 = pneg %p147
        %s216 = sand.u32 %s137, 1
        %s217 = scalar_lea.sflag [#allocation3], %s216
        %s218 = sand.u32 %s137, 1
        %s219 = smul.addr %s218, 16
        %s220 = scalar_lea.vmem [#allocation2], %s219
        %s221 = smul.u32 2, %s19
        %p222 = scmp.lt.s32.totalorder %s221, 3
        %s223 = scalar_select %p222, %s221, 3
        %s224 = smul.addr %s223, 2
        %s225 = smul.addr %s224, 8
        %s226 = scalar_lea.vmem %s0, %s225
        %s227 = smul.u32 2, %s19
        %s228 = smul.u32 2, %s19
        %v229 = vld [vmem:[%s226] sm:$0xff]
        %v230 = vld [vmem:[%s226 + $0x8] sm:$0xff]
        %v231 = vld [vmem:[%s226 + $0x10] sm:$0xff]
        %v232 = vld [vmem:[%s226 + $0x18] sm:$0xff]
        %v233 = vld [vmem:[%s1] sm:$0xff]
        %v234 = vld [vmem:[%s1 + $0x8] sm:$0xff]
        %v235 = vld [vmem:[%s1 + $0x10] sm:$0xff]
        %v236 = vld [vmem:[%s1 + $0x18] sm:$0xff]
        %v237 = vld [vmem:[%s1 + $0x20] sm:$0xff]
        %v238 = vld [vmem:[%s1 + $0x28] sm:$0xff]
        %v239 = vld [vmem:[%s1 + $0x30] sm:$0xff]
        %v240 = vld [vmem:[%s1 + $0x38] sm:$0xff]
        %v241 = vld [vmem:[%s1 + $0x40] sm:$0xff]
        %v242 = vld [vmem:[%s1 + $0x48] sm:$0xff]
        %v243 = vld [vmem:[%s1 + $0x50] sm:$0xff]
        %v244 = vld [vmem:[%s1 + $0x58] sm:$0xff]
        %v245 = vld [vmem:[%s1 + $0x60] sm:$0xff]
        %v246 = vld [vmem:[%s1 + $0x68] sm:$0xff]
        %v247 = vld [vmem:[%s1 + $0x70] sm:$0xff]
        %v248 = vld [vmem:[%s1 + $0x78] sm:$0xff]
        %v249 = vld [vmem:[%s1 + $0x80] sm:$0xff]
        %v250 = vld [vmem:[%s1 + $0x88] sm:$0xff]
        %v251 = vld [vmem:[%s1 + $0x90] sm:$0xff]
        %v252 = vld [vmem:[%s1 + $0x98] sm:$0xff]
        %v253 = vld [vmem:[%s1 + $0xa0] sm:$0xff]
        %v254 = vld [vmem:[%s1 + $0xa8] sm:$0xff]
        %v255 = vld [vmem:[%s1 + $0xb0] sm:$0xff]
        %v256 = vld [vmem:[%s1 + $0xb8] sm:$0xff]
        %v257 = vld [vmem:[%s1 + $0xc0] sm:$0xf]
        %v258 = vld [vmem:[%s2] sm:$0x1]
        %v260 = vlaneseq
        %v261 = vshrl.u32 %v260, 7
        %v262 = vsub.s32 0, %v261
        %v263 = vrot.slane %v258, %v262
        %vm265 = vcmask 556032
        %v267 = vsel %vm265, %v230, 0
        %v270 = vsel %vm265, %v232, 0
        %vm272 = vcmask 1043456
        %v274 = vsel %vm272, %v257, 0
        %276 = vmatprep.subr.mxu0 0.0
        %277 = vmatpush1.msra.mxu0 %v248
        %278 = vmatprep.subr.mxu0 0.0
        %279 = vmatpush1.msra.mxu0 %v247
        %280 = vmatprep.subr.mxu0 0.0
        %281 = vmatpush1.msra.mxu0 %v246
        %282 = vmatprep.subr.mxu0 0.0
        %283 = vmatpush1.msra.mxu0 %v245
        %284 = vmatprep.subr.mxu0 0.0
        %285 = vmatpush1.msra.mxu0 %v244
        %286 = vmatprep.subr.mxu0 0.0
        %287 = vmatpush1.msra.mxu0 %v243
        %288 = vmatprep.subr.mxu0 0.0
        %289 = vmatpush1.msra.mxu0 %v242
        %290 = vmatprep.subr.mxu0 0.0
        %291 = vmatpush1.msra.mxu0 %v241
        %292 = vmatprep.subr.mxu0 0.0
        %293 = vmatpush1.msra.mxu0 %v240
        %294 = vmatprep.subr.mxu0 0.0
        %295 = vmatpush1.msra.mxu0 %v239
        %296 = vmatprep.subr.mxu0 0.0
        %297 = vmatpush1.msra.mxu0 %v238
        %298 = vmatprep.subr.mxu0 0.0
        %299 = vmatpush1.msra.mxu0 %v237
        %300 = vmatprep.subr.mxu0 0.0
        %301 = vmatpush1.msra.mxu0 %v236
        %302 = vmatprep.subr.mxu0 0.0
        %303 = vmatpush1.msra.mxu0 %v235
        %304 = vmatprep.subr.mxu0 0.0
        %305 = vmatpush1.msra.mxu0 %v234
        %306 = vmatprep.subr.mxu0 0.0
        %307 = vmatpush1.msra.mxu0 %v233
        %308 = vmatprep.subr.mxu0 0.0
        %309 = vmatpush2.msra.mxu0 0.0
        %310 = vmatprep.subr.mxu0 0.0
        %311 = vmatpush2.msra.mxu0 0.0
        %312 = vmatprep.subr.mxu0 0.0
        %313 = vmatpush2.msra.mxu0 0.0
        %314 = vmatprep.subr.mxu0 0.0
        %315 = vmatpush2.msra.mxu0 0.0
        %316 = vmatprep.subr.mxu0 0.0
        %317 = vmatpush2.msra.mxu0 0.0
        %318 = vmatprep.subr.mxu0 0.0
        %319 = vmatpush2.msra.mxu0 0.0
        %320 = vmatprep.subr.mxu0 0.0
        %321 = vmatpush2.msra.mxu0 0.0
        %322 = vmatprep.subr.mxu0 0.0
        %323 = vmatpush2.msra.mxu0 %v274
        %324 = vmatprep.subr.mxu0 0.0
        %325 = vmatpush2.msra.mxu0 %v256
        %326 = vmatprep.subr.mxu0 0.0
        %327 = vmatpush2.msra.mxu0 %v255
        %328 = vmatprep.subr.mxu0 0.0
        %329 = vmatpush2.msra.mxu0 %v254
        %330 = vmatprep.subr.mxu0 0.0
        %331 = vmatpush2.msra.mxu0 %v253
        %332 = vmatprep.subr.mxu0 0.0
        %333 = vmatpush2.msra.mxu0 %v252
        %334 = vmatprep.subr.mxu0 0.0
        %335 = vmatpush2.msra.mxu0 %v251
        %336 = vmatprep.subr.mxu0 0.0
        %337 = vmatpush2.msra.mxu0 %v250
        %338 = vmatprep.subr.mxu0 0.0
        %339 = vmatpush2.msra.mxu0 %v249
        %340 = vmatprep.mubr.f32.mxu0 %v267
        %341 = vmatmul.mubr.f32.gmra.mxu0 %v229
        %v342 = vpop.f32.mrf.mxu0
        %v343 = vadd.f32 %v263, %v342
        %v344 = vpop.f32.mrf.mxu0
        %345 = vmatprep.mubr.f32.mxu0 %v270
        %346 = vmatmul.mubr.f32.gmra.mxu0 %v231
        %v347 = vpop.f32.mrf.mxu0
        %v348 = vadd.f32 %v263, %v347
        %v349 = vpop.f32.mrf.mxu0
        %350 = vdwg.mxu0
        %vm351 = vcmask 261120
        %v352 = vsel %vm351, %v343, 0.0
        %353 = vadd.xlane.f32.xlu0 %v352
        %v354 = vpop.xlane.xlu0 %353
        %v355 = vsel %vm351, %v348, 0.0
        %356 = vadd.xlane.f32.xlu0 %v355
        %v357 = vpop.xlane.xlu0 %356
        %v358 = vmul.f32 %v354, 0.03125
        %v359 = vmul.f32 %v357, 0.03125
        %v360 = vsub.f32 %v343, %v358
        %v361 = vsub.f32 %v348, %v359
        %v362 = vmul.f32 %v360, %v360
        %v363 = vmul.f32 %v361, %v361
        %v364 = vsel %vm351, %v362, 0.0
        %365 = vadd.xlane.f32.xlu0 %v364
        %v366 = vpop.xlane.xlu0 %365
        %v367 = vsel %vm351, %v363, 0.0
        %368 = vadd.xlane.f32.xlu0 %v367
        %v369 = vpop.xlane.xlu0 %368
        %v370 = vmul.f32 %v366, 0.03125
        %v371 = vmul.f32 %v369, 0.03125
        %v372 = vadd.f32 %v370, 1e-05
        %v373 = vadd.f32 %v371, 1e-05
        %v374 = vrsqrt.pop %v372
        %v375 = vrsqrt.pop %v373
        %v376 = vld [vmem:[%s3] sm:$0x1]
        %v378 = vlaneseq
        %v379 = vshrl.u32 %v378, 7
        %v380 = vsub.s32 0, %v379
        %v381 = vrot.slane %v376, %v380
        %v383 = vmul.f32 %v374, %v381
        %v384 = vmul.f32 %v375, %v381
        %v385 = vmul.f32 %v360, %v383
        %v386 = vmul.f32 %v361, %v384
        %v387 = vld [vmem:[%s4] sm:$0x1]
        %v389 = vlaneseq
        %v390 = vshrl.u32 %v389, 7
        %v391 = vsub.s32 0, %v390
        %v392 = vrot.slane %v387, %v391
        %v394 = vadd.f32 %v385, %v392
        %v395 = vadd.f32 %v386, %v392
        %396 = vst.msk [vmem:[%s220] sm:$0xff] %vm351, %v394
        %397 = vst.msk [vmem:[%s220 + $0x8] sm:$0xff] %vm351, %v395
        %s398 = sand.u32 %s137, 1
        %s399 = scalar_lea.sflag [#allocation3], %s398
        %s400 = sand.u32 %s137, 1
        %s401 = smul.addr %s400, 16
        %s402 = scalar_lea.vmem [#allocation2], %s401
        // Predicated region
        $region41: #{tpu_custom_call.1} parent=39 // pred_check
          %p403 = pneg %p147
        $region42: #{tpu_custom_call.1} parent=39 // pred_check_branch
          %405 = sbr.rel (%p403) target = $region44
        $region43: #{tpu_custom_call.1} parent=39 // pred_region
          %s406 = smul.u32 2, %s19
          %s408 = ssub.s32 256, 256
          %409 = vsyncadd %s399, %s408
          %s410 = smul.addr %s406, 128
          %s411 = scalar_lea.hbm %s5, %s410
          %s412 = sshll.u32 %s402, 4
          %s413 = int_to_ptr.vmem [resolvable:$true] %s412
          %418 = dma.vmem_to_hbm [thread:$0]  %s413, 256, %s411, %s399, 128, 128, 8
        $region44: #{tpu_custom_call.1} parent=39 // pred_fallthru
          _
      $region40: #{tpu_custom_call.1} parent=5 // pred_fallthru
        _
      %p419 = scmp.le.s32.totalorder 2, %s14
      // Predicated region
      $region45: #{tpu_custom_call.1} parent=5 // pred_check
        %p420 = pneg %p419
      $region46: #{tpu_custom_call.1} parent=5 // pred_check_branch
        %422 = sbr.rel (%p420) target = $region48
      $region47: #{tpu_custom_call.1} parent=5 // pred_region
        %s423 = ssub.s32 %s14, 2
        // Predicated region
        $region49: #{tpu_custom_call.1} parent=47 // pred_check
          %p424 = pneg %p153
        $region50: #{tpu_custom_call.1} parent=47 // pred_check_branch
          %426 = sbr.rel (%p424) target = $region52
        $region51: #{tpu_custom_call.1} parent=47 // pred_region
          %s427 = sand.u32 %s138, 1
          %s428 = scalar_lea.sflag [#allocation3], %s427
          %s429 = sand.u32 %s138, 1
          %s430 = smul.addr %s429, 16
          %s431 = scalar_lea.vmem [#allocation2], %s430
          %432 = dma.done %s428, 256
        $region52: #{tpu_custom_call.1} parent=47 // pred_fallthru
          _
      $region48: #{tpu_custom_call.1} parent=5 // pred_fallthru
        _
    $region6: #{tpu_custom_call.1} parent=1 // loop_footer
      %s18 = sadd.s32 1, %s14
    $region7: #{tpu_custom_call.1} parent=1 // loop_footer_branch
      %13 = sbr.rel target = $region3
    $region8: #{tpu_custom_call.1} parent=1 // loop_exit
      _
    %433 = vsyncpa [#allocation3], 1
    %s434 = scalar_lea.sflag [#allocation3], 1
    %435 = vsyncpa %s434, 1

</llo_original>
